<compile_context>
chip_gen: v7x
topology: tpu7x:2x2x1
jax: 0.10.0
libtpu: 0.0.40
codegen_flags: <defaults>
</compile_context>

<pallas_src>
import jax
import jax.numpy as jnp
from jax import lax
from jax.experimental import pallas as pl
from jax.experimental.pallas import tpu as pltpu


def _classifier_kernel(x_ref, w1_ref, b1_ref, w2t_ref, b2_ref, out_ref):
    # fc1 + bias + ReLU: (TB, E) @ (E, H) on the MXU, f32 accumulation.
    h = jnp.dot(x_ref[...], w1_ref[...], preferred_element_type=jnp.float32)
    h = jnp.maximum(h + b1_ref[...], 0.0)          # (TB, H) + (1, H) broadcast

    # TODO(synk): dropout is identity at inference; training-mode dropout
    # (pltpu.prng_random_bits mask + 1/(1-p) scale) is not implemented here.

    # fc2 + sigmoid, emitted transposed:
    #   logits_t (C, TB) = w2^T (C, H) contracted with h (TB, H) over H.
    # Keeping the output block (C, TB) makes the store lane-dense even when
    # C == 1 (full-lane vst instead of masked vst.msk).
    logits_t = lax.dot_general(
        w2t_ref[...], h,
        dimension_numbers=(((1,), (1,)), ((), ())),
        preferred_element_type=jnp.float32,
    )
    logits_t = logits_t + b2_ref[...]              # (C, TB) + (C, 1) broadcast
    out_ref[...] = jax.nn.sigmoid(logits_t).astype(out_ref.dtype)


def _round_up(x, m):
    return (x + m - 1) // m * m


def embedding_classifier(x, w1, b1, w2, b2, *, block_b=None, use_bf16_inputs=False):
    """x: [B, E], w1: [E, H], b1: [H], w2: [H, C], b2: [C]  ->  [B, C] f32."""
    B, E = x.shape
    H = w1.shape[1]
    C = w2.shape[1]

    # Tile sizing: big, lane-aligned batch tiles. With small E even TB=4096 is
    # ~1 MiB double-buffered -> far under the scoped-VMEM default on
    # v5e/v6e/v7x, so no vmem_limit override is needed.
    if block_b is None:
        block_b = min(4096, _round_up(B, 128))
    TB = _round_up(block_b, 128)          # multiple of 128 -> lane-dense out store
    B_pad = _round_up(B, TB)
    num_tiles = B_pad // TB

    # Pad batch so the grid divides evenly; padded rows are sliced off below.
    if B_pad != B:
        x = jnp.pad(x, ((0, B_pad - B), (0, 0)))

    # bf16 MXU inputs (v6e/v7x HBM-traffic win); keep f32 accumulation and all
    # post-matmul elementwise work in f32.
    if use_bf16_inputs:
        x = x.astype(jnp.bfloat16)
        w1 = w1.astype(jnp.bfloat16)

    b1_2d = b1.reshape(1, H).astype(jnp.float32)
    w2_t = jnp.transpose(w2)                       # (C, H) — lane dim is H
    b2_col = b2.reshape(C, 1).astype(jnp.float32)

    cost = pl.CostEstimate(
        flops=2 * B_pad * E * H + 2 * B_pad * H * C,
        transcendentals=B_pad * C,
        bytes_accessed=(x.size * x.dtype.itemsize
                        + w1.size * w1.dtype.itemsize
                        + H * 4 + H * C * 4 + C * 4
                        + B_pad * C * 4),
    )

    out_t = pl.pallas_call(
        _classifier_kernel,
        out_shape=jax.ShapeDtypeStruct((C, B_pad), jnp.float32),
        grid_spec=pl.GridSpec(
            grid=(num_tiles,),
            in_specs=[
                pl.BlockSpec((TB, E), lambda i: (i, 0)),   # x tile (pipelined)
                pl.BlockSpec((E, H), lambda i: (0, 0)),    # w1   (VMEM-resident)
                pl.BlockSpec((1, H), lambda i: (0, 0)),    # b1   (VMEM-resident)
                pl.BlockSpec((C, H), lambda i: (0, 0)),    # w2^T (VMEM-resident)
                pl.BlockSpec((C, 1), lambda i: (0, 0)),    # b2   (VMEM-resident)
            ],
            out_specs=pl.BlockSpec((C, TB), lambda i: (0, i)),
        ),
        compiler_params=pltpu.CompilerParams(
            dimension_semantics=("parallel",),
        ),
        cost_estimate=cost,
    )(x, w1, b1_2d, w2_t, b2_col)

    # (C, B_pad) -> (B, C)
    return jnp.transpose(out_t)[:B, :]


def reference(x, w1, b1, w2, b2):
    h = jnp.maximum(x @ w1 + b1, 0.0)
    return jax.nn.sigmoid(h @ w2 + b2)


if __name__ == "__main__":
    embedding_size = 32
    hidden = 128          # fixed by the module (nn.Linear(embedding_size, 128))
    num_classes = 1
    batch = 8

    key = jax.random.PRNGKey(0)
    kx, kw1, kb1, kw2, kb2 = jax.random.split(key, 5)

    x = jax.random.normal(kx, (batch, embedding_size), dtype=jnp.float32)

    # Deterministic parameter init (uniform, roughly matching nn.Linear scale).
    lim1 = 1.0 / (embedding_size ** 0.5)
    w1 = jax.random.uniform(kw1, (embedding_size, hidden), jnp.float32, -lim1, lim1)
    b1 = jax.random.uniform(kb1, (hidden,), jnp.float32, -lim1, lim1)
    lim2 = 1.0 / (hidden ** 0.5)
    w2 = jax.random.uniform(kw2, (hidden, num_classes), jnp.float32, -lim2, lim2)
    b2 = jax.random.uniform(kb2, (num_classes,), jnp.float32, -lim2, lim2)

    ref = reference(x, w1, b1, w2, b2)

    # 1) f32 path (strict tolerance), single padded tile.
    out = embedding_classifier(x, w1, b1, w2, b2)
    out = jax.block_until_ready(out)
    assert out.shape == (batch, num_classes)
    assert jnp.allclose(out, ref, atol=1e-5, rtol=1e-5), "f32 mismatch vs reference"

    # 2) Multi-tile path (forces several grid steps + batch padding).
    batch_big = 300
    x_big = jax.random.normal(kx, (batch_big, embedding_size), dtype=jnp.float32)
    out_big = embedding_classifier(x_big, w1, b1, w2, b2, block_b=128)
    out_big = jax.block_until_ready(out_big)
    ref_big = reference(x_big, w1, b1, w2, b2)
    assert out_big.shape == (batch_big, num_classes)
    assert jnp.allclose(out_big, ref_big, atol=1e-5, rtol=1e-5), "tiled mismatch"

    # 3) bf16-input path (v6e/v7x HBM optimization) — looser tolerance.
    out_bf16 = embedding_classifier(x_big, w1, b1, w2, b2, block_b=128,
                                    use_bf16_inputs=True)
    out_bf16 = jax.block_until_ready(out_bf16)
    assert jnp.allclose(out_bf16, ref_big, atol=2e-2, rtol=2e-2), "bf16 mismatch"

    print("KERNEL_OK")
</pallas_src>

<mosaic_0001>
module attributes {stable_mosaic.version = 11 : i64} {
  func.func @_classifier_kernel(%arg0: i32, %arg1: memref<128x32xf32, #tpu.memory_space<vmem>>, %arg2: memref<32x128xf32, #tpu.memory_space<vmem>>, %arg3: memref<1x128xf32, #tpu.memory_space<vmem>>, %arg4: memref<1x128xf32, #tpu.memory_space<vmem>>, %arg5: memref<1x1xf32, #tpu.memory_space<vmem>>, %arg6: memref<1x128xf32, #tpu.memory_space<vmem>>) attributes {dimension_semantics = [#tpu.dimension_semantics<parallel>], iteration_bounds = array<i64: 1>, scalar_prefetch = 0 : i64, scratch_operands = 0 : i64, tpu.core_type = #tpu.core_type<tc>, window_params = [{transform_indices = @transform_0, window_bounds = array<i64: 128, 32>}, {pipeline_mode = #tpu.pipeline_mode<synchronous>, transform_indices = @transform_1, window_bounds = array<i64: 32, 128>}, {pipeline_mode = #tpu.pipeline_mode<synchronous>, transform_indices = @transform_2, window_bounds = array<i64: 1, 128>}, {pipeline_mode = #tpu.pipeline_mode<synchronous>, transform_indices = @transform_3, window_bounds = array<i64: 1, 128>}, {pipeline_mode = #tpu.pipeline_mode<synchronous>, transform_indices = @transform_4, window_bounds = array<i64: 1, 1>}, {transform_indices = @transform_5, window_bounds = array<i64: 1, 128>}]} {
    %c0 = arith.constant 0 : index
    %c0_0 = arith.constant 0 : index
    %0 = vector.load %arg1[%c0, %c0_0] : memref<128x32xf32, #tpu.memory_space<vmem>>, vector<128x32xf32>
    %c0_1 = arith.constant 0 : index
    %c0_2 = arith.constant 0 : index
    %1 = vector.load %arg2[%c0_1, %c0_2] : memref<32x128xf32, #tpu.memory_space<vmem>>, vector<32x128xf32>
    %cst = arith.constant dense<0.000000e+00> : vector<128x128xf32>
    %2 = tpu.matmul %0, %1, %cst {dimension_numbers = #tpu.dot_dimension_numbers<[1], [0], [0], [1], [0, 0, 1, 1], [], []>} : vector<128x32xf32>, vector<32x128xf32>, vector<128x128xf32> -> vector<128x128xf32>
    %c0_3 = arith.constant 0 : index
    %c0_4 = arith.constant 0 : index
    %3 = vector.load %arg3[%c0_3, %c0_4] : memref<1x128xf32, #tpu.memory_space<vmem>>, vector<1x128xf32>
    %4 = vector.broadcast %3 : vector<1x128xf32> to vector<128x128xf32>
    %5 = arith.addf %2, %4 : vector<128x128xf32>
    %cst_5 = arith.constant 0.000000e+00 : f32
    %6 = vector.broadcast %cst_5 : f32 to vector<128x128xf32>
    %7 = arith.maximumf %5, %6 : vector<128x128xf32>
    %c0_6 = arith.constant 0 : index
    %c0_7 = arith.constant 0 : index
    %8 = vector.load %arg4[%c0_6, %c0_7] : memref<1x128xf32, #tpu.memory_space<vmem>>, vector<1x128xf32>
    %cst_8 = arith.constant dense<0.000000e+00> : vector<1x128xf32>
    %9 = tpu.matmul %8, %7, %cst_8 {dimension_numbers = #tpu.dot_dimension_numbers<[1], [1], [0], [0], [0, 0, 1, 0], [], []>} : vector<1x128xf32>, vector<128x128xf32>, vector<1x128xf32> -> vector<1x128xf32>
    %c0_9 = arith.constant 0 : index
    %c0_10 = arith.constant 0 : index
    %10 = vector.load %arg5[%c0_9, %c0_10] : memref<1x1xf32, #tpu.memory_space<vmem>>, vector<1x1xf32>
    %11 = vector.broadcast %10 : vector<1x1xf32> to vector<1x128xf32>
    %12 = arith.addf %9, %11 : vector<1x128xf32>
    %13 = arith.negf %12 : vector<1x128xf32>
    %14 = math.exp %13 : vector<1x128xf32>
    %cst_11 = arith.constant 1.000000e+00 : f32
    %15 = vector.broadcast %cst_11 : f32 to vector<1x128xf32>
    %16 = arith.addf %15, %14 : vector<1x128xf32>
    %17 = arith.divf %15, %16 : vector<1x128xf32>
    %c0_12 = arith.constant 0 : index
    %c0_13 = arith.constant 0 : index
    %18 = vector.load %arg6[%c0_12, %c0_13] : memref<1x128xf32, #tpu.memory_space<vmem>>, vector<1x128xf32>
    tpu.vector_store %arg6[%c0_12, %c0_13], %17 {strides = array<i32>} : memref<1x128xf32, #tpu.memory_space<vmem>>, vector<1x128xf32>,
    return
  }
  func.func @transform_0(%arg0: i32) -> (i32, i32) {
    %c0_i32 = arith.constant 0 : i32
    %c0_i32_0 = arith.constant 0 : i32
    return %arg0, %c0_i32 : i32, i32
  }
  func.func @transform_1(%arg0: i32) -> (i32, i32) {
    %c0_i32 = arith.constant 0 : i32
    %c0_i32_0 = arith.constant 0 : i32
    %c0_i32_1 = arith.constant 0 : i32
    return %c0_i32, %c0_i32_0 : i32, i32
  }
  func.func @transform_2(%arg0: i32) -> (i32, i32) {
    %c0_i32 = arith.constant 0 : i32
    %c0_i32_0 = arith.constant 0 : i32
    %c0_i32_1 = arith.constant 0 : i32
    return %c0_i32, %c0_i32_0 : i32, i32
  }
  func.func @transform_3(%arg0: i32) -> (i32, i32) {
    %c0_i32 = arith.constant 0 : i32
    %c0_i32_0 = arith.constant 0 : i32
    %c0_i32_1 = arith.constant 0 : i32
    return %c0_i32, %c0_i32_0 : i32, i32
  }
  func.func @transform_4(%arg0: i32) -> (i32, i32) {
    %c0_i32 = arith.constant 0 : i32
    %c0_i32_0 = arith.constant 0 : i32
    %c0_i32_1 = arith.constant 0 : i32
    return %c0_i32, %c0_i32_0 : i32, i32
  }
  func.func @transform_5(%arg0: i32) -> (i32, i32) {
    %c0_i32 = arith.constant 0 : i32
    %c0_i32_0 = arith.constant 0 : i32
    return %c0_i32, %arg0 : i32, i32
  }
}

</mosaic_0001>

<llo_original>
// kernel: tpu_custom_call.1
$region0: #{tpu_custom_call.1}
  #allocation0 [shape = 'u32[]', space=smem, size = 0x4, offset = 0x4, fixed_abs, tag = 'smem constant byte address 0x4 - core index']
  #allocation1 [shape = 'u32[144,128]{1,0:T(1,128)}', space=vmem, size = 0x12000, scoped, tag = 'internal scratch']
  #allocation2 [shape = 'f32[1,1]{1,0:T(1,128)S(1)}', space=vmem, size = 0x200, scoped, tag = 'scoped memory for tpu_custom_call.1']
  %s0 = inlined_call_operand.vmem [shape: f32[128,32], index: 0, kind: input, shape index: {}]
  %s1 = inlined_call_operand.vmem [shape: f32[32,128], index: 1, kind: input, shape index: {}]
  %s2 = inlined_call_operand.vmem [shape: f32[1,128], index: 2, kind: input, shape index: {}]
  %s3 = inlined_call_operand.vmem [shape: f32[1,128], index: 3, kind: input, shape index: {}]
  %s4 = inlined_call_operand.<no memory space> [shape: f32[1,1], index: 4, kind: input, shape index: {}]
  %s5 = inlined_call_operand.hbm [shape: f32[1,128], index: 5, kind: output, shape index: {}]
  %s6 = sld [smem:[#allocation0]]
  $region30: #{tpu_custom_call.1} parent=0
    _
  %s8 = ssub.s32 1, %s6
  %s9 = scalar_select 0, %s8, %s6
  %v10 = vstv %s4
  %11 = vst [vmem:[#allocation2] sm:$0x1] %v10
  $region1: #{tpu_custom_call.1} parent=0
    #allocation3 [shape = 'u8[512]{0}', space=vmem, size = 0x400, scoped, tag = 'output window, operand 0, single buffered']
    #allocation4 [shape = 's32[1]{0}', space=sflag, size = 0x4, scoped, tag = 'scoped memory for tpu_custom_call.1']
    %12 = vsyncpa [#allocation4], 0
    // Predicated region
    $region2: #{tpu_custom_call.1} parent=1 // pred_check
      _
    $region3: #{tpu_custom_call.1} parent=1 // pred_check_branch
      %14 = sbr.rel (0) target = $region5
    $region4: #{tpu_custom_call.1} parent=1 // pred_region
      _
    $region5: #{tpu_custom_call.1} parent=1 // pred_fallthru
      _
    // Predicated region
    $region6: #{tpu_custom_call.1} parent=1 // pred_check
      _
    $region7: #{tpu_custom_call.1} parent=1 // pred_check_branch
      %16 = sbr.rel (0) target = $region9
    $region8: #{tpu_custom_call.1} parent=1 // pred_region
      _
    $region9: #{tpu_custom_call.1} parent=1 // pred_fallthru
      _
    // Predicated region
    $region10: #{tpu_custom_call.1} parent=1 // pred_check
      _
    $region11: #{tpu_custom_call.1} parent=1 // pred_check_branch
      %18 = sbr.rel (0) target = $region13
    $region12: #{tpu_custom_call.1} parent=1 // pred_region
      _
    $region13: #{tpu_custom_call.1} parent=1 // pred_fallthru
      _
    // Predicated region
    $region14: #{tpu_custom_call.1} parent=1 // pred_check
      _
    $region15: #{tpu_custom_call.1} parent=1 // pred_check_branch
      %20 = sbr.rel (0) target = $region17
    $region16: #{tpu_custom_call.1} parent=1 // pred_region
      _
    $region17: #{tpu_custom_call.1} parent=1 // pred_fallthru
      _
    // Predicated region
    $region18: #{tpu_custom_call.1} parent=1 // pred_check
      _
    $region19: #{tpu_custom_call.1} parent=1 // pred_check_branch
      %22 = sbr.rel (0) target = $region21
    $region20: #{tpu_custom_call.1} parent=1 // pred_region
      _
    $region21: #{tpu_custom_call.1} parent=1 // pred_fallthru
      _
    %v23 = vld [vmem:[%s0] sm:$0xff]
    %v24 = vld [vmem:[%s0 + $0x8] sm:$0xff]
    %v25 = vld [vmem:[%s0 + $0x10] sm:$0xff]
    %v26 = vld [vmem:[%s0 + $0x18] sm:$0xff]
    %v27 = vld [vmem:[%s0 + $0x20] sm:$0xff]
    %v28 = vld [vmem:[%s0 + $0x28] sm:$0xff]
    %v29 = vld [vmem:[%s0 + $0x30] sm:$0xff]
    %v30 = vld [vmem:[%s0 + $0x38] sm:$0xff]
    %v31 = vld [vmem:[%s0 + $0x40] sm:$0xff]
    %v32 = vld [vmem:[%s0 + $0x48] sm:$0xff]
    %v33 = vld [vmem:[%s0 + $0x50] sm:$0xff]
    %v34 = vld [vmem:[%s0 + $0x58] sm:$0xff]
    %v35 = vld [vmem:[%s0 + $0x60] sm:$0xff]
    %v36 = vld [vmem:[%s0 + $0x68] sm:$0xff]
    %v37 = vld [vmem:[%s0 + $0x70] sm:$0xff]
    %v38 = vld [vmem:[%s0 + $0x78] sm:$0xff]
    %v39 = vld [vmem:[%s1] sm:$0xff]
    %v40 = vld [vmem:[%s1 + $0x8] sm:$0xff]
    %v41 = vld [vmem:[%s1 + $0x10] sm:$0xff]
    %v42 = vld [vmem:[%s1 + $0x18] sm:$0xff]
    %v43 = vld [vmem:[%s2] sm:$0x1]
    %v45 = vlaneseq
    %v46 = vshrl.u32 %v45, 7
    %v47 = vsub.s32 0, %v46
    %v48 = vrot.slane %v43, %v47
    %vm50 = vcmask 261120
    %v52 = vsel %vm50, %v23, 0
    %v55 = vsel %vm50, %v24, 0
    %v58 = vsel %vm50, %v25, 0
    %v61 = vsel %vm50, %v26, 0
    %v64 = vsel %vm50, %v27, 0
    %v67 = vsel %vm50, %v28, 0
    %v70 = vsel %vm50, %v29, 0
    %v73 = vsel %vm50, %v30, 0
    %v76 = vsel %vm50, %v31, 0
    %v79 = vsel %vm50, %v32, 0
    %v82 = vsel %vm50, %v33, 0
    %v85 = vsel %vm50, %v34, 0
    %v88 = vsel %vm50, %v35, 0
    %v91 = vsel %vm50, %v36, 0
    %v94 = vsel %vm50, %v37, 0
    %v97 = vsel %vm50, %v38, 0
    %99 = vmatprep.subr.mxu0 0.0
    %100 = vmatpush1.msra.mxu0 %v39
    %101 = vmatprep.subr.mxu0 0.0
    %102 = vmatpush1.msra.mxu0 %v40
    %103 = vmatprep.subr.mxu0 0.0
    %104 = vmatpush1.msra.mxu0 %v41
    %105 = vmatprep.subr.mxu0 0.0
    %106 = vmatpush1.msra.mxu0 %v42
    %107 = vmatprep.subr.mxu0 0.0
    %108 = vmatpush1.msra.mxu0 0.0
    %109 = vmatprep.subr.mxu0 0.0
    %110 = vmatpush1.msra.mxu0 0.0
    %111 = vmatprep.subr.mxu0 0.0
    %112 = vmatpush1.msra.mxu0 0.0
    %113 = vmatprep.subr.mxu0 0.0
    %114 = vmatpush1.msra.mxu0 0.0
    %115 = vmatprep.subr.mxu0 0.0
    %116 = vmatpush1.msra.mxu0 0.0
    %117 = vmatprep.subr.mxu0 0.0
    %118 = vmatpush1.msra.mxu0 0.0
    %119 = vmatprep.subr.mxu0 0.0
    %120 = vmatpush1.msra.mxu0 0.0
    %121 = vmatprep.subr.mxu0 0.0
    %122 = vmatpush1.msra.mxu0 0.0
    %123 = vmatprep.subr.mxu0 0.0
    %124 = vmatpush1.msra.mxu0 0.0
    %125 = vmatprep.subr.mxu0 0.0
    %126 = vmatpush1.msra.mxu0 0.0
    %127 = vmatprep.subr.mxu0 0.0
    %128 = vmatpush1.msra.mxu0 0.0
    %129 = vmatprep.subr.mxu0 0.0
    %130 = vmatpush1.msra.mxu0 0.0
    %131 = vmatprep.subr.mxu0 0.0
    %132 = vmatpush1.msra.mxu0 0.0
    %133 = vmatprep.subr.mxu0 0.0
    %134 = vmatpush1.msra.mxu0 0.0
    %135 = vmatprep.subr.mxu0 0.0
    %136 = vmatpush1.msra.mxu0 0.0
    %137 = vmatprep.subr.mxu0 0.0
    %138 = vmatpush1.msra.mxu0 0.0
    %139 = vmatprep.subr.mxu0 0.0
    %140 = vmatpush1.msra.mxu0 0.0
    %141 = vmatprep.subr.mxu0 0.0
    %142 = vmatpush1.msra.mxu0 0.0
    %143 = vmatprep.subr.mxu0 0.0
    %144 = vmatpush1.msra.mxu0 0.0
    %145 = vmatprep.subr.mxu0 0.0
    %146 = vmatpush1.msra.mxu0 0.0
    %147 = vmatprep.subr.mxu0 0.0
    %148 = vmatpush1.msra.mxu0 0.0
    %149 = vmatprep.subr.mxu0 0.0
    %150 = vmatpush1.msra.mxu0 0.0
    %151 = vmatprep.subr.mxu0 0.0
    %152 = vmatpush1.msra.mxu0 0.0
    %153 = vmatprep.subr.mxu0 0.0
    %154 = vmatpush1.msra.mxu0 0.0
    %155 = vmatprep.subr.mxu0 0.0
    %156 = vmatpush1.msra.mxu0 0.0
    %157 = vmatprep.subr.mxu0 0.0
    %158 = vmatpush1.msra.mxu0 0.0
    %159 = vmatprep.subr.mxu0 0.0
    %160 = vmatpush1.msra.mxu0 0.0
    %161 = vmatprep.subr.mxu0 0.0
    %162 = vmatpush1.msra.mxu0 0.0
    %163 = vmatprep.mubr.f32.mxu0 0.0
    %164 = vmatmul.mubr.f32.gmra.mrb[0].mxu0 %v52
    %v165 = vpop.f32.mrb[0].mxu0
    %v166 = vadd.f32 %v48, %v165
    %v167 = vpop.f32.mrb[0].mxu0
    %168 = vmatprep.mubr.f32.mxu0 0.0
    %169 = vmatmul.mubr.f32.gmra.mrb[0].mxu0 %v55
    %v170 = vpop.f32.mrb[0].mxu0
    %v171 = vadd.f32 %v48, %v170
    %v172 = vpop.f32.mrb[0].mxu0
    %173 = vmatprep.mubr.f32.mxu0 0.0
    %174 = vmatmul.mubr.f32.gmra.mrb[0].mxu0 %v58
    %v175 = vpop.f32.mrb[0].mxu0
    %v176 = vadd.f32 %v48, %v175
    %v177 = vpop.f32.mrb[0].mxu0
    %178 = vmatprep.mubr.f32.mxu0 0.0
    %179 = vmatmul.mubr.f32.gmra.mrb[0].mxu0 %v61
    %v180 = vpop.f32.mrb[0].mxu0
    %v181 = vadd.f32 %v48, %v180
    %v182 = vpop.f32.mrb[0].mxu0
    %183 = vmatprep.mubr.f32.mxu0 0.0
    %184 = vmatmul.mubr.f32.gmra.mrb[0].mxu0 %v64
    %v185 = vpop.f32.mrb[0].mxu0
    %v186 = vadd.f32 %v48, %v185
    %v187 = vpop.f32.mrb[0].mxu0
    %188 = vmatprep.mubr.f32.mxu0 0.0
    %189 = vmatmul.mubr.f32.gmra.mrb[0].mxu0 %v67
    %v190 = vpop.f32.mrb[0].mxu0
    %v191 = vadd.f32 %v48, %v190
    %v192 = vpop.f32.mrb[0].mxu0
    %193 = vmatprep.mubr.f32.mxu0 0.0
    %194 = vmatmul.mubr.f32.gmra.mrb[0].mxu0 %v70
    %v195 = vpop.f32.mrb[0].mxu0
    %v196 = vadd.f32 %v48, %v195
    %v197 = vpop.f32.mrb[0].mxu0
    %198 = vmatprep.mubr.f32.mxu0 0.0
    %199 = vmatmul.mubr.f32.gmra.mrb[0].mxu0 %v73
    %v200 = vpop.f32.mrb[0].mxu0
    %v201 = vadd.f32 %v48, %v200
    %v202 = vpop.f32.mrb[0].mxu0
    %203 = vmatprep.mubr.f32.mxu0 0.0
    %204 = vmatmul.mubr.f32.gmra.mrb[0].mxu0 %v76
    %v205 = vpop.f32.mrb[0].mxu0
    %v206 = vadd.f32 %v48, %v205
    %v207 = vpop.f32.mrb[0].mxu0
    %208 = vmatprep.mubr.f32.mxu0 0.0
    %209 = vmatmul.mubr.f32.gmra.mrb[0].mxu0 %v79
    %v210 = vpop.f32.mrb[0].mxu0
    %v211 = vadd.f32 %v48, %v210
    %v212 = vpop.f32.mrb[0].mxu0
    %213 = vmatprep.mubr.f32.mxu0 0.0
    %214 = vmatmul.mubr.f32.gmra.mrb[0].mxu0 %v82
    %v215 = vpop.f32.mrb[0].mxu0
    %v216 = vadd.f32 %v48, %v215
    %v217 = vpop.f32.mrb[0].mxu0
    %218 = vmatprep.mubr.f32.mxu0 0.0
    %219 = vmatmul.mubr.f32.gmra.mrb[0].mxu0 %v85
    %v220 = vpop.f32.mrb[0].mxu0
    %v221 = vadd.f32 %v48, %v220
    %v222 = vpop.f32.mrb[0].mxu0
    %223 = vmatprep.mubr.f32.mxu0 0.0
    %224 = vmatmul.mubr.f32.gmra.mrb[0].mxu0 %v88
    %v225 = vpop.f32.mrb[0].mxu0
    %v226 = vadd.f32 %v48, %v225
    %v227 = vpop.f32.mrb[0].mxu0
    %228 = vmatprep.mubr.f32.mxu0 0.0
    %229 = vmatmul.mubr.f32.gmra.mrb[0].mxu0 %v91
    %v230 = vpop.f32.mrb[0].mxu0
    %v231 = vadd.f32 %v48, %v230
    %v232 = vpop.f32.mrb[0].mxu0
    %233 = vmatprep.mubr.f32.mxu0 0.0
    %234 = vmatmul.mubr.f32.gmra.mrb[0].mxu0 %v94
    %v235 = vpop.f32.mrb[0].mxu0
    %v236 = vadd.f32 %v48, %v235
    %v237 = vpop.f32.mrb[0].mxu0
    %238 = vmatprep.mubr.f32.mxu0 0.0
    %239 = vmatmul.mubr.f32.gmra.mrb[0].mxu0 %v97
    %v240 = vpop.f32.mrb[0].mxu0
    %v241 = vadd.f32 %v48, %v240
    %v242 = vpop.f32.mrb[0].mxu0
    %243 = vdwg.mxu0
    %v244 = vmax.f32 %v166, 0.0
    %v245 = vmax.f32 %v171, 0.0
    %v246 = vmax.f32 %v176, 0.0
    %v247 = vmax.f32 %v181, 0.0
    %v248 = vmax.f32 %v186, 0.0
    %v249 = vmax.f32 %v191, 0.0
    %v250 = vmax.f32 %v196, 0.0
    %v251 = vmax.f32 %v201, 0.0
    %v252 = vmax.f32 %v206, 0.0
    %v253 = vmax.f32 %v211, 0.0
    %v254 = vmax.f32 %v216, 0.0
    %v255 = vmax.f32 %v221, 0.0
    %v256 = vmax.f32 %v226, 0.0
    %v257 = vmax.f32 %v231, 0.0
    %v258 = vmax.f32 %v236, 0.0
    %v259 = vmax.f32 %v241, 0.0
    %v260 = vld [vmem:[%s3] sm:$0x1]
    %v261 = vld [vmem:[#allocation2] sm:$0x1]
    %263 = vset.pattern.permute.xlu0 0
    %264 = vperm.xlu0 %263, %v261
    %v265 = vpop.permute.xlu0 %264
    %v267 = vlaneseq
    %v268 = vshrl.u32 %v267, 7
    %v269 = vsub.s32 0, %v268
    %v270 = vrot.slane %v265, %v269
    %271 = vmatprep.subr.mxu0 0.0
    %272 = vmatpush1.xpose.msra.mxu0 %v244
    %273 = vmatprep.subr.mxu0 0.0
    %274 = vmatpush1.xpose.msra.mxu0 %v245
    %275 = vmatprep.subr.mxu0 0.0
    %276 = vmatpush1.xpose.msra.mxu0 %v246
    %277 = vmatprep.subr.mxu0 0.0
    %278 = vmatpush1.xpose.msra.mxu0 %v247
    %279 = vmatprep.subr.mxu0 0.0
    %280 = vmatpush1.xpose.msra.mxu0 %v248
    %281 = vmatprep.subr.mxu0 0.0
    %282 = vmatpush1.xpose.msra.mxu0 %v249
    %283 = vmatprep.subr.mxu0 0.0
    %284 = vmatpush1.xpose.msra.mxu0 %v250
    %285 = vmatprep.subr.mxu0 0.0
    %286 = vmatpush1.xpose.msra.mxu0 %v251
    %287 = vmatprep.subr.mxu0 0.0
    %288 = vmatpush1.xpose.msra.mxu0 %v252
    %289 = vmatprep.subr.mxu0 0.0
    %290 = vmatpush1.xpose.msra.mxu0 %v253
    %291 = vmatprep.subr.mxu0 0.0
    %292 = vmatpush1.xpose.msra.mxu0 %v254
    %293 = vmatprep.subr.mxu0 0.0
    %294 = vmatpush1.xpose.msra.mxu0 %v255
    %295 = vmatprep.subr.mxu0 0.0
    %296 = vmatpush1.xpose.msra.mxu0 %v256
    %297 = vmatprep.subr.mxu0 0.0
    %298 = vmatpush1.xpose.msra.mxu0 %v257
    %299 = vmatprep.subr.mxu0 0.0
    %300 = vmatpush1.xpose.msra.mxu0 %v258
    %301 = vmatprep.subr.mxu0 0.0
    %302 = vmatpush1.xpose.msra.mxu0 %v259
    %303 = vmatprep.subr.mxu0 0.0
    %304 = vmatpush1.xpose.msra.mxu0 0.0
    %305 = vmatprep.subr.mxu0 0.0
    %306 = vmatpush1.xpose.msra.mxu0 0.0
    %307 = vmatprep.subr.mxu0 0.0
    %308 = vmatpush1.xpose.msra.mxu0 0.0
    %309 = vmatprep.subr.mxu0 0.0
    %310 = vmatpush1.xpose.msra.mxu0 0.0
    %311 = vmatprep.subr.mxu0 0.0
    %312 = vmatpush1.xpose.msra.mxu0 0.0
    %313 = vmatprep.subr.mxu0 0.0
    %314 = vmatpush1.xpose.msra.mxu0 0.0
    %315 = vmatprep.subr.mxu0 0.0
    %316 = vmatpush1.xpose.msra.mxu0 0.0
    %317 = vmatprep.subr.mxu0 0.0
    %318 = vmatpush1.xpose.msra.mxu0 0.0
    %319 = vmatprep.subr.mxu0 0.0
    %320 = vmatpush1.xpose.msra.mxu0 0.0
    %321 = vmatprep.subr.mxu0 0.0
    %322 = vmatpush1.xpose.msra.mxu0 0.0
    %323 = vmatprep.subr.mxu0 0.0
    %324 = vmatpush1.xpose.msra.mxu0 0.0
    %325 = vmatprep.subr.mxu0 0.0
    %326 = vmatpush1.xpose.msra.mxu0 0.0
    %327 = vmatprep.subr.mxu0 0.0
    %328 = vmatpush1.xpose.msra.mxu0 0.0
    %329 = vmatprep.subr.mxu0 0.0
    %330 = vmatpush1.xpose.msra.mxu0 0.0
    %331 = vmatprep.subr.mxu0 0.0
    %332 = vmatpush1.xpose.msra.mxu0 0.0
    %333 = vmatprep.subr.mxu0 0.0
    %334 = vmatpush1.xpose.msra.mxu0 0.0
    %335 = vmatprep.mubr.f32.mxu0 0.0
    %336 = vmatmul.mubr.f32.gmra.mrb[0].mxu0 %v260
    %v337 = vpop.f32.mrb[0].mxu0
    %v338 = vadd.f32 %v270, %v337
    %v339 = vpop.f32.mrb[0].mxu0
    %340 = vdwg.mxu0
    %v341 = vxor.u32 %v338, 2147483648
    %v342 = vmul.f32 %v341, 1.442695
    %v343 = vpow.pop %v342
    %v344 = vadd.f32 %v343, 1.0
    %v345 = vrcp.pop %v344
    %v346 = vmul.f32 1.0, %v345
    %347 = vst [vmem:[#allocation3] sm:$0x1] %v346
    // Predicated region
    $region22: #{tpu_custom_call.1} parent=1 // pred_check
      _
    $region23: #{tpu_custom_call.1} parent=1 // pred_check_branch
      %349 = sbr.rel (0) target = $region25
    $region24: #{tpu_custom_call.1} parent=1 // pred_region
      %s351 = ssub.s32 16, 16
      %352 = vsyncadd [#allocation4], %s351
      %s354 = sshll.u32 [#allocation3], 4
      %s355 = int_to_ptr.vmem [resolvable:$true] %s354
      %357 = dma.vmem_to_hbm [thread:$0]  %s355, 16, %s5, [#allocation4]
    $region25: #{tpu_custom_call.1} parent=1 // pred_fallthru
      _
    // Predicated region
    $region26: #{tpu_custom_call.1} parent=1 // pred_check
      _
    $region27: #{tpu_custom_call.1} parent=1 // pred_check_branch
      %359 = sbr.rel (0) target = $region29
    $region28: #{tpu_custom_call.1} parent=1 // pred_region
      %360 = dma.done [#allocation4], 16
    $region29: #{tpu_custom_call.1} parent=1 // pred_fallthru
      _
    %361 = vsyncpa [#allocation4], 1

</llo_original>
